<compile_context>
chip_gen: v7x
topology: tpu7x:2x2x1
jax: 0.10.0
libtpu: 0.0.40
codegen_flags: <defaults>
</compile_context>

<pallas_src>
import functools

import jax
import jax.numpy as jnp
from jax.experimental import pallas as pl
from jax.experimental.pallas import tpu as pltpu

_INV_SQRT2 = 0.7071067811865476


def _round_up(x, m):
    return (x + m - 1) // m * m


def _nessie_hellinger_kernel(mo_ref, cn_ref, tlog_ref, out_ref, *,
                             num_k, need_softmax):
    """Per-row Hellinger distance between target pmf and predicted mixture pmf.

    mo_ref   : [TM, 2K]  (mixture-weight logits | rate logits)
    cn_ref   : [TM, N]   copy numbers
    tlog_ref : [TM, N]   target probability logits
    out_ref  : [1, TM]   per-row Hellinger distance (lane-dense)
    """
    mo = mo_ref[...].astype(jnp.float32)
    cn = cn_ref[...].astype(jnp.float32)
    tlog = tlog_ref[...].astype(jnp.float32)

    # Static lane slices within a single vreg (2K << 128): free.
    mix = mo[:, :num_k]
    rate = mo[:, num_k:]

    # Mixture weights: stable softmax over the K components ([TM, K] is tiny);
    # the divide happens only on the [TM, 1] denominator.
    m = jnp.max(mix, axis=-1, keepdims=True)
    e = jnp.exp(mix - m)
    w = e * pl.reciprocal(jnp.sum(e, axis=-1, keepdims=True), approx=False)

    # Geometric parameters, numerically stable for large |rate|:
    #   log p   = log_sigmoid(rate)      (never -inf -> no 0*inf NaN)
    #   (1 - p) = sigmoid(-rate)
    log_p = jax.nn.log_sigmoid(rate)                     # [TM, K]
    coef = w * jax.nn.sigmoid(-rate)                     # w_k * (1 - p_k)

    # predict_probility = sum_k coef_k * p_k ** copy_number
    # Unrolled over the K static components; each term is one dense [TM, N]
    # exp (EUP) plus a multiply-add (VPU).
    pred = jnp.zeros_like(cn)
    for k in range(num_k):
        pred = pred + coef[:, k:k + 1] * jnp.exp(cn * log_p[:, k:k + 1])

    # target_probility: softmax over the support axis (PyTorch dim=1), fused
    # with the sqrt needed by the Hellinger distance:
    #   sqrt(softmax(x))_n = exp((x_n - max)/2) * rsqrt(sum_m exp(x_m - max))
    # -> one dense EUP pass (exp_half) instead of exp + divide + sqrt.
    if need_softmax:
        t_max = jnp.max(tlog, axis=-1, keepdims=True)
        exp_half = jnp.exp((tlog - t_max) * 0.5)                       # [TM, N]
        denom = jnp.sum(exp_half * exp_half, axis=-1, keepdims=True)   # [TM, 1]
        sqrt_t = exp_half * jax.lax.rsqrt(denom)
    else:
        # Matches torch.sqrt on the raw targets: caller must supply
        # non-negative probabilities (negative entries produce NaN, as in
        # the PyTorch module).
        sqrt_t = jnp.sqrt(tlog)

    diff = sqrt_t - jnp.sqrt(pred)
    row = jnp.sqrt(jnp.sum(diff * diff, axis=-1)) * _INV_SQRT2         # [TM]
    out_ref[...] = row[None, :]                                        # lane-dense store


def nessie_hellinger_distance(model_out, target, need_softmax=True,
                              block_rows=None, vmem_budget_bytes=12 << 20):
    """model_out: [A, 2K]; target: [A, N, 2] = (copy_number, prob_logit)."""
    A, N, two = target.shape
    assert two == 2
    K = model_out.shape[1] // 2

    # De-interleave target (mirrors target.transpose(0,2).transpose(1,2)):
    # [A, N, 2] -> [2, A, N].  The (cn, logit) pairing is along the innermost
    # (lane) axis; an in-kernel split would need lane-strided loads or
    # cross-vreg lane gathers, which do not lower reliably, so this stays as
    # one fused XLA transpose pass in the wrapper.
    t2 = jnp.moveaxis(target, -1, 0)
    cn, tlog = t2[0], t2[1]                  # [A, N] each, native dtype

    # Batch-tile size: multiple of 8 sublanes (multiple of 128 when large so
    # the lane-dense output store is unmasked).  The budget covers the
    # double-buffered inputs *and* the ~6 live [TM, N] f32 temporaries of the
    # kernel body, so the kernel fits v7x's 64 MiB VMEM with headroom; the
    # explicit vmem_limit_bytes below also lifts v5e's 16 MiB default scoped
    # limit so large tiles remain possible there.
    if block_rows is None:
        in_itemsize = max(jnp.dtype(model_out.dtype).itemsize,
                          jnp.dtype(target.dtype).itemsize)
        per_row_inputs = 2 * (2 * N + 2 * K) * in_itemsize   # x2 double-buffer
        per_row_temps = 6 * N * 4 + 8 * K * 4                # live f32 temporaries
        per_row = per_row_inputs + per_row_temps
        block_rows = max(8, (vmem_budget_bytes // per_row) // 8 * 8)
        if block_rows >= 128:
            block_rows = block_rows // 128 * 128
    tm = int(max(8, min(_round_up(A, 8), block_rows)))

    a_pad = _round_up(A, tm)
    if a_pad != A:
        pad = ((0, a_pad - A), (0, 0))
        cn = jnp.pad(cn, pad)
        tlog = jnp.pad(tlog, pad)
        mo = jnp.pad(model_out, pad)
    else:
        mo = model_out
    num_tiles = a_pad // tm

    kernel = functools.partial(_nessie_hellinger_kernel,
                               num_k=K, need_softmax=need_softmax)
    per_tile = pl.pallas_call(
        kernel,
        out_shape=jax.ShapeDtypeStruct((num_tiles, tm), jnp.float32),
        grid=(num_tiles,),
        in_specs=[
            pl.BlockSpec((tm, 2 * K), lambda i: (i, 0)),
            pl.BlockSpec((tm, N), lambda i: (i, 0)),
            pl.BlockSpec((tm, N), lambda i: (i, 0)),
        ],
        out_specs=pl.BlockSpec((1, tm), lambda i: (i, 0)),
        compiler_params=pltpu.CompilerParams(
            dimension_semantics=("parallel",),
            vmem_limit_bytes=32 * 1024 * 1024),
    )(mo, cn, tlog)

    # Drop padded rows (they compute garbage loss); mean over the true batch
    # size (q_predict.batch_size).
    per_row_loss = per_tile.reshape(a_pad)
    return jnp.sum(per_row_loss[:A]) / jnp.float32(A)


def _reference(model_out, target, need_softmax=True):
    """Pure-JAX reference mirroring the PyTorch forward semantics."""
    A, N, _ = target.shape
    K = model_out.shape[1] // 2
    cn = target[..., 0].astype(jnp.float32)
    tlog = target[..., 1].astype(jnp.float32)
    w = jax.nn.softmax(model_out[:, :K].astype(jnp.float32), axis=-1)
    rate = model_out[:, K:].astype(jnp.float32)
    log_p = jax.nn.log_sigmoid(rate)
    one_m_p = jax.nn.sigmoid(-rate)
    pred = jnp.sum(w[:, None, :] * one_m_p[:, None, :]
                   * jnp.exp(cn[:, :, None] * log_p[:, None, :]), axis=-1)
    tprob = jax.nn.softmax(tlog, axis=1) if need_softmax else tlog
    loss = jnp.square(jnp.sqrt(tprob) - jnp.sqrt(pred))
    loss = jnp.sqrt(loss.sum(axis=-1)) / jnp.sqrt(jnp.float32(2.0))
    loss = loss.sum(axis=-1)
    return loss.sum() / A


if __name__ == "__main__":
    key = jax.random.PRNGKey(0)

    # Small case (matches the module's expected shapes).
    A, N, K = 2, 16, 4
    k1, k2, k3, k4 = jax.random.split(key, 4)
    model_out = jax.random.normal(k1, (A, 2 * K), dtype=jnp.float32)
    copy_numbers = jnp.tile(jnp.arange(N, dtype=jnp.float32), (A, 1))
    prob_logits = jax.random.normal(k2, (A, N), dtype=jnp.float32)
    target = jnp.stack([copy_numbers, prob_logits], axis=-1)       # [A, N, 2]

    loss = jax.block_until_ready(
        nessie_hellinger_distance(model_out, target, need_softmax=True))
    ref = _reference(model_out, target, need_softmax=True)
    assert jnp.allclose(loss, ref, rtol=1e-5, atol=1e-5), (loss, ref)

    # Larger case that exercises multi-tile grid + ragged-batch padding.
    A2, N2, K2 = 20, 256, 4
    model_out2 = jax.random.normal(k3, (A2, 2 * K2), dtype=jnp.float32)
    cn2 = jnp.tile(jnp.arange(N2, dtype=jnp.float32), (A2, 1))
    pl2 = jax.random.normal(k4, (A2, N2), dtype=jnp.float32)
    target2 = jnp.stack([cn2, pl2], axis=-1)
    loss2 = jax.block_until_ready(
        nessie_hellinger_distance(model_out2, target2, need_softmax=True,
                                  block_rows=8))
    ref2 = _reference(model_out2, target2, need_softmax=True)
    assert jnp.allclose(loss2, ref2, rtol=1e-5, atol=1e-5), (loss2, ref2)

    print("KERNEL_OK")
</pallas_src>

<mosaic_0001>
module attributes {stable_mosaic.version = 11 : i64} {
  func.func @_nessie_hellinger_kernel(%arg0: i32, %arg1: memref<8x8xf32, #tpu.memory_space<vmem>>, %arg2: memref<8x16xf32, #tpu.memory_space<vmem>>, %arg3: memref<8x16xf32, #tpu.memory_space<vmem>>, %arg4: memref<1x8xf32, #tpu.memory_space<vmem>>) attributes {dimension_semantics = [#tpu.dimension_semantics<parallel>], iteration_bounds = array<i64: 1>, scalar_prefetch = 0 : i64, scratch_operands = 0 : i64, tpu.core_type = #tpu.core_type<tc>, window_params = [{transform_indices = @transform_0, window_bounds = array<i64: 8, 8>}, {transform_indices = @transform_1, window_bounds = array<i64: 8, 16>}, {transform_indices = @transform_2, window_bounds = array<i64: 8, 16>}, {transform_indices = @transform_3, window_bounds = array<i64: 1, 8>}]} {
    %c0 = arith.constant 0 : index
    %c0_0 = arith.constant 0 : index
    %0 = vector.load %arg1[%c0, %c0_0] : memref<8x8xf32, #tpu.memory_space<vmem>>, vector<8x8xf32>
    %c0_1 = arith.constant 0 : index
    %c0_2 = arith.constant 0 : index
    %1 = vector.load %arg2[%c0_1, %c0_2] : memref<8x16xf32, #tpu.memory_space<vmem>>, vector<8x16xf32>
    %c0_3 = arith.constant 0 : index
    %c0_4 = arith.constant 0 : index
    %2 = vector.load %arg3[%c0_3, %c0_4] : memref<8x16xf32, #tpu.memory_space<vmem>>, vector<8x16xf32>
    %3 = vector.extract_strided_slice %0 {offsets = [0, 0], sizes = [8, 4], strides = [1, 1]} : vector<8x8xf32> to vector<8x4xf32>
    %4 = vector.extract_strided_slice %0 {offsets = [0, 4], sizes = [8, 4], strides = [1, 1]} : vector<8x8xf32> to vector<8x4xf32>
    %cst = arith.constant dense<0xFF800000> : vector<8xf32>
    %5 = vector.multi_reduction <maximumf>, %3, %cst [1] : vector<8x4xf32> to vector<8xf32>
    %6 = vector.shape_cast %5 : vector<8xf32> to vector<8x1xf32>
    %7 = vector.broadcast %6 : vector<8x1xf32> to vector<8x4xf32>
    %8 = arith.subf %3, %7 : vector<8x4xf32>
    %9 = math.exp %8 : vector<8x4xf32>
    %cst_5 = arith.constant dense<0.000000e+00> : vector<8xf32>
    %10 = vector.multi_reduction <add>, %9, %cst_5 [1] : vector<8x4xf32> to vector<8xf32>
    %11 = vector.shape_cast %10 : vector<8xf32> to vector<8x1xf32>
    %12 = tpu.reciprocal %11 : vector<8x1xf32> -> vector<8x1xf32>
    %13 = vector.broadcast %12 : vector<8x1xf32> to vector<8x4xf32>
    %14 = arith.mulf %9, %13 : vector<8x4xf32>
    %cst_6 = arith.constant 0.000000e+00 : f32
    %15 = vector.broadcast %cst_6 : f32 to vector<8x4xf32>
    %16 = arith.subf %15, %4 : vector<8x4xf32>
    %cst_7 = arith.constant 0.000000e+00 : f32
    %17 = vector.broadcast %cst_7 : f32 to vector<8x4xf32>
    %18 = arith.maximumf %16, %17 : vector<8x4xf32>
    %19 = vector.broadcast %cst_7 : f32 to vector<8x4xf32>
    %20 = arith.subf %16, %19 : vector<8x4xf32>
    %21 = arith.cmpf one, %20, %20 : vector<8x4xf32>
    %22 = vector.broadcast %cst_7 : f32 to vector<8x4xf32>
    %23 = arith.addf %16, %22 : vector<8x4xf32>
    %24 = math.absf %20 : vector<8x4xf32>
    %cst_8 = arith.constant 0.000000e+00 : f32
    %25 = vector.broadcast %cst_8 : f32 to vector<8x4xf32>
    %26 = arith.subf %25, %24 : vector<8x4xf32>
    %27 = math.exp %26 : vector<8x4xf32>
    %28 = math.log1p %27 : vector<8x4xf32>
    %29 = arith.addf %18, %28 : vector<8x4xf32>
    %30 = arith.select %21, %23, %29 : vector<8x4xi1>, vector<8x4xf32>
    %cst_9 = arith.constant 0.000000e+00 : f32
    %31 = vector.broadcast %cst_9 : f32 to vector<8x4xf32>
    %32 = arith.subf %31, %30 : vector<8x4xf32>
    %cst_10 = arith.constant 0.000000e+00 : f32
    %33 = vector.broadcast %cst_10 : f32 to vector<8x4xf32>
    %34 = arith.subf %33, %4 : vector<8x4xf32>
    %35 = arith.negf %34 : vector<8x4xf32>
    %36 = math.exp %35 : vector<8x4xf32>
    %cst_11 = arith.constant 1.000000e+00 : f32
    %37 = vector.broadcast %cst_11 : f32 to vector<8x4xf32>
    %38 = arith.addf %37, %36 : vector<8x4xf32>
    %39 = arith.divf %37, %38 : vector<8x4xf32>
    %40 = arith.mulf %14, %39 : vector<8x4xf32>
    %cst_12 = arith.constant 0.000000e+00 : f32
    %41 = vector.broadcast %cst_12 : f32 to vector<8x16xf32>
    %42 = vector.extract_strided_slice %40 {offsets = [0, 0], sizes = [8, 1], strides = [1, 1]} : vector<8x4xf32> to vector<8x1xf32>
    %43 = vector.extract_strided_slice %32 {offsets = [0, 0], sizes = [8, 1], strides = [1, 1]} : vector<8x4xf32> to vector<8x1xf32>
    %44 = vector.broadcast %43 : vector<8x1xf32> to vector<8x16xf32>
    %45 = arith.mulf %1, %44 : vector<8x16xf32>
    %46 = math.exp %45 : vector<8x16xf32>
    %47 = vector.broadcast %42 : vector<8x1xf32> to vector<8x16xf32>
    %48 = arith.mulf %47, %46 : vector<8x16xf32>
    %49 = arith.addf %41, %48 : vector<8x16xf32>
    %50 = vector.extract_strided_slice %40 {offsets = [0, 1], sizes = [8, 1], strides = [1, 1]} : vector<8x4xf32> to vector<8x1xf32>
    %51 = vector.extract_strided_slice %32 {offsets = [0, 1], sizes = [8, 1], strides = [1, 1]} : vector<8x4xf32> to vector<8x1xf32>
    %52 = vector.broadcast %51 : vector<8x1xf32> to vector<8x16xf32>
    %53 = arith.mulf %1, %52 : vector<8x16xf32>
    %54 = math.exp %53 : vector<8x16xf32>
    %55 = vector.broadcast %50 : vector<8x1xf32> to vector<8x16xf32>
    %56 = arith.mulf %55, %54 : vector<8x16xf32>
    %57 = arith.addf %49, %56 : vector<8x16xf32>
    %58 = vector.extract_strided_slice %40 {offsets = [0, 2], sizes = [8, 1], strides = [1, 1]} : vector<8x4xf32> to vector<8x1xf32>
    %59 = vector.extract_strided_slice %32 {offsets = [0, 2], sizes = [8, 1], strides = [1, 1]} : vector<8x4xf32> to vector<8x1xf32>
    %60 = vector.broadcast %59 : vector<8x1xf32> to vector<8x16xf32>
    %61 = arith.mulf %1, %60 : vector<8x16xf32>
    %62 = math.exp %61 : vector<8x16xf32>
    %63 = vector.broadcast %58 : vector<8x1xf32> to vector<8x16xf32>
    %64 = arith.mulf %63, %62 : vector<8x16xf32>
    %65 = arith.addf %57, %64 : vector<8x16xf32>
    %66 = vector.extract_strided_slice %40 {offsets = [0, 3], sizes = [8, 1], strides = [1, 1]} : vector<8x4xf32> to vector<8x1xf32>
    %67 = vector.extract_strided_slice %32 {offsets = [0, 3], sizes = [8, 1], strides = [1, 1]} : vector<8x4xf32> to vector<8x1xf32>
    %68 = vector.broadcast %67 : vector<8x1xf32> to vector<8x16xf32>
    %69 = arith.mulf %1, %68 : vector<8x16xf32>
    %70 = math.exp %69 : vector<8x16xf32>
    %71 = vector.broadcast %66 : vector<8x1xf32> to vector<8x16xf32>
    %72 = arith.mulf %71, %70 : vector<8x16xf32>
    %73 = arith.addf %65, %72 : vector<8x16xf32>
    %cst_13 = arith.constant dense<0xFF800000> : vector<8xf32>
    %74 = vector.multi_reduction <maximumf>, %2, %cst_13 [1] : vector<8x16xf32> to vector<8xf32>
    %75 = vector.shape_cast %74 : vector<8xf32> to vector<8x1xf32>
    %76 = vector.broadcast %75 : vector<8x1xf32> to vector<8x16xf32>
    %77 = arith.subf %2, %76 : vector<8x16xf32>
    %cst_14 = arith.constant 5.000000e-01 : f32
    %78 = vector.broadcast %cst_14 : f32 to vector<8x16xf32>
    %79 = arith.mulf %77, %78 : vector<8x16xf32>
    %80 = math.exp %79 : vector<8x16xf32>
    %81 = arith.mulf %80, %80 : vector<8x16xf32>
    %cst_15 = arith.constant dense<0.000000e+00> : vector<8xf32>
    %82 = vector.multi_reduction <add>, %81, %cst_15 [1] : vector<8x16xf32> to vector<8xf32>
    %83 = vector.shape_cast %82 : vector<8xf32> to vector<8x1xf32>
    %84 = math.rsqrt %83 : vector<8x1xf32>
    %85 = vector.broadcast %84 : vector<8x1xf32> to vector<8x16xf32>
    %86 = arith.mulf %80, %85 : vector<8x16xf32>
    %87 = math.sqrt %73 : vector<8x16xf32>
    %88 = arith.subf %86, %87 : vector<8x16xf32>
    %89 = arith.mulf %88, %88 : vector<8x16xf32>
    %cst_16 = arith.constant dense<0.000000e+00> : vector<8xf32>
    %90 = vector.multi_reduction <add>, %89, %cst_16 [1] : vector<8x16xf32> to vector<8xf32>
    %91 = math.sqrt %90 : vector<8xf32>
    %cst_17 = arith.constant 0.707106769 : f32
    %92 = vector.broadcast %cst_17 : f32 to vector<8xf32>
    %93 = arith.mulf %91, %92 : vector<8xf32>
    %94 = vector.shape_cast %93 : vector<8xf32> to vector<1x8xf32>
    %c0_18 = arith.constant 0 : index
    %c0_19 = arith.constant 0 : index
    %95 = vector.load %arg4[%c0_18, %c0_19] : memref<1x8xf32, #tpu.memory_space<vmem>>, vector<1x8xf32>
    tpu.vector_store %arg4[%c0_18, %c0_19], %94 {strides = array<i32>} : memref<1x8xf32, #tpu.memory_space<vmem>>, vector<1x8xf32>,
    return
  }
  func.func @transform_0(%arg0: i32) -> (i32, i32) {
    %c0_i32 = arith.constant 0 : i32
    %c0_i32_0 = arith.constant 0 : i32
    return %arg0, %c0_i32 : i32, i32
  }
  func.func @transform_1(%arg0: i32) -> (i32, i32) {
    %c0_i32 = arith.constant 0 : i32
    %c0_i32_0 = arith.constant 0 : i32
    return %arg0, %c0_i32 : i32, i32
  }
  func.func @transform_2(%arg0: i32) -> (i32, i32) {
    %c0_i32 = arith.constant 0 : i32
    %c0_i32_0 = arith.constant 0 : i32
    return %arg0, %c0_i32 : i32, i32
  }
  func.func @transform_3(%arg0: i32) -> (i32, i32) {
    %c0_i32 = arith.constant 0 : i32
    %c0_i32_0 = arith.constant 0 : i32
    return %arg0, %c0_i32 : i32, i32
  }
}

</mosaic_0001>

<llo_original>
// kernel: tpu_custom_call.1
$region0: #{tpu_custom_call.1}
  #allocation0 [shape = 'u32[]', space=smem, size = 0x4, offset = 0x4, fixed_abs, tag = 'smem constant byte address 0x4 - core index']
  #allocation1 [shape = 'u32[144,128]{1,0:T(1,128)}', space=vmem, size = 0x12000, scoped, tag = 'internal scratch']
  %s0 = inlined_call_operand.hbm [shape: f32[8,8], index: 0, kind: input, shape index: {}]
  %s1 = inlined_call_operand.hbm [shape: f32[8,16], index: 1, kind: input, shape index: {}]
  %s2 = inlined_call_operand.hbm [shape: f32[8,16], index: 2, kind: input, shape index: {}]
  %s3 = inlined_call_operand.hbm [shape: f32[1,8], index: 3, kind: output, shape index: {}]
  %s4 = sld [smem:[#allocation0]]
  $region34: #{tpu_custom_call.1} parent=0
    _
  %s6 = ssub.s32 1, %s4
  %s7 = scalar_select 0, %s6, %s4
  $region1: #{tpu_custom_call.1} parent=0
    #allocation2 [shape = 'u8[4096]{0}', space=vmem, size = 0x1000, scoped, tag = 'input window, operand 0, single buffered']
    #allocation3 [shape = 's32[1]{0}', space=sflag, size = 0x4, scoped, tag = 'scoped memory for tpu_custom_call.1']
    #allocation4 [shape = 's32[1]{0}', space=sflag, size = 0x4, scoped, tag = 'scoped memory for tpu_custom_call.1']
    #allocation5 [shape = 'u8[4096]{0}', space=vmem, size = 0x1000, scoped, tag = 'input window, operand 1, single buffered']
    #allocation6 [shape = 's32[1]{0}', space=sflag, size = 0x4, scoped, tag = 'scoped memory for tpu_custom_call.1']
    #allocation7 [shape = 'u8[4096]{0}', space=vmem, size = 0x1000, scoped, tag = 'input window, operand 2, single buffered']
    #allocation8 [shape = 'u8[512]{0}', space=vmem, size = 0x400, scoped, tag = 'output window, operand 0, single buffered']
    %8 = vsyncpa [#allocation3], 0
    %9 = vsyncpa [#allocation6], 0
    %10 = vsyncpa [#allocation4], 0
    // Predicated region
    $region2: #{tpu_custom_call.1} parent=1 // pred_check
      _
    $region3: #{tpu_custom_call.1} parent=1 // pred_check_branch
      %12 = sbr.rel (0) target = $region5
    $region4: #{tpu_custom_call.1} parent=1 // pred_region
      %s14 = ssub.s32 128, 128
      %15 = vsyncadd [#allocation3], %s14
      %s17 = sshll.u32 [#allocation2], 4
      %s18 = int_to_ptr.vmem [resolvable:$true] %s17
      %20 = dma.hbm_to_vmem [thread:$0]  %s0, 128, %s18, [#allocation3]
    $region5: #{tpu_custom_call.1} parent=1 // pred_fallthru
      _
    // Predicated region
    $region6: #{tpu_custom_call.1} parent=1 // pred_check
      _
    $region7: #{tpu_custom_call.1} parent=1 // pred_check_branch
      %22 = sbr.rel (0) target = $region9
    $region8: #{tpu_custom_call.1} parent=1 // pred_region
      %s24 = ssub.s32 128, 128
      %25 = vsyncadd [#allocation6], %s24
      %s27 = sshll.u32 [#allocation5], 4
      %s28 = int_to_ptr.vmem [resolvable:$true] %s27
      %30 = dma.hbm_to_vmem [thread:$0]  %s1, 128, %s28, [#allocation6]
    $region9: #{tpu_custom_call.1} parent=1 // pred_fallthru
      _
    // Predicated region
    $region10: #{tpu_custom_call.1} parent=1 // pred_check
      _
    $region11: #{tpu_custom_call.1} parent=1 // pred_check_branch
      %32 = sbr.rel (0) target = $region13
    $region12: #{tpu_custom_call.1} parent=1 // pred_region
      %s34 = ssub.s32 128, 128
      %35 = vsyncadd [#allocation6], %s34
      %s37 = sshll.u32 [#allocation7], 4
      %s38 = int_to_ptr.vmem [resolvable:$true] %s37
      %40 = dma.hbm_to_vmem [thread:$0]  %s2, 128, %s38, [#allocation6]
    $region13: #{tpu_custom_call.1} parent=1 // pred_fallthru
      _
    // Predicated region
    $region14: #{tpu_custom_call.1} parent=1 // pred_check
      _
    $region15: #{tpu_custom_call.1} parent=1 // pred_check_branch
      %42 = sbr.rel (0) target = $region17
    $region16: #{tpu_custom_call.1} parent=1 // pred_region
      %43 = dma.done [#allocation3], 128
    $region17: #{tpu_custom_call.1} parent=1 // pred_fallthru
      _
    // Predicated region
    $region18: #{tpu_custom_call.1} parent=1 // pred_check
      _
    $region19: #{tpu_custom_call.1} parent=1 // pred_check_branch
      %45 = sbr.rel (0) target = $region21
    $region20: #{tpu_custom_call.1} parent=1 // pred_region
      %46 = dma.done [#allocation6], 128
    $region21: #{tpu_custom_call.1} parent=1 // pred_fallthru
      _
    // Predicated region
    $region22: #{tpu_custom_call.1} parent=1 // pred_check
      _
    $region23: #{tpu_custom_call.1} parent=1 // pred_check_branch
      %48 = sbr.rel (0) target = $region25
    $region24: #{tpu_custom_call.1} parent=1 // pred_region
      %49 = dma.done [#allocation6], 128
    $region25: #{tpu_custom_call.1} parent=1 // pred_fallthru
      _
    %v50 = vld [vmem:[#allocation2] sm:$0xff]
    %v51 = vld [vmem:[#allocation5] sm:$0xff]
    %v52 = vld [vmem:[#allocation7] sm:$0xff]
    %vm53 = vcmask 31744
    %v54 = vsel %vm53, %v50, -inf
    %55 = vmax.xlane.f32.xlu0 %v54
    %v56 = vpop.xlane.xlu0 %55
    %v57 = vsub.f32 %v50, %v56
    %v58 = vmul.f32 %v57, 1.442695
    %v59 = vpow.pop %v58
    %v60 = vsel %vm53, %v59, 0.0
    %61 = vadd.xlane.f32.xlu0 %v60
    %v62 = vpop.xlane.xlu0 %61
    %v63 = vrcp.pop %v62
    %v64 = vmul.f32 %v59, %v63
    %v65 = vsub.f32 0.0, %v50
    %v66 = vmax.f32 %v65, 0.0
    %vm67 = vcmp.ne.f32.partialorder %v65, %v65
    %v68 = vadd.f32 %v65, 0.0
    %v69 = vand.u32 2147483647, %v65
    %v70 = vsub.f32 0.0, %v69
    %v71 = vmul.f32 %v70, 1.442695
    %v72 = vpow.pop %v71
    %v73 = vadd.f32 %v72, 1.0
    %v74 = vlog2.pop %v73
    %v75 = vmul.f32 %v74, 0.6931472
    %v76 = vmul.f32 -0.5, %v72
    %v77 = vadd.f32 %v76, 1.0
    %v78 = vmul.f32 %v77, %v72
    %v79 = vand.u32 2147483647, %v72
    %vm80 = vcmp.lt.f32.partialorder %v79, 0.0004427343
    %v81 = vsel %vm80, %v78, %v75
    %v82 = vadd.f32 %v66, %v81
    %v83 = vsel %vm67, %v68, %v82
    %v84 = vsub.f32 0.0, %v83
    %v85 = vxor.u32 %v65, 2147483648
    %v86 = vmul.f32 %v85, 1.442695
    %v87 = vpow.pop %v86
    %v88 = vadd.f32 %v87, 1.0
    %v89 = vrcp.pop %v88
    %v90 = vmul.f32 1.0, %v89
    %92 = vrot.lane.b32.xlu0 %v90, 124
    %v93 = vpop.permute.xlu0 %92
    %v95 = vmul.f32 %v64, %v93
    %97 = vset.pattern.permute.xlu0 4
    %98 = vperm.xlu0 %97, %v84
    %v99 = vpop.permute.xlu0 %98
    %v101 = vmul.f32 %v51, %v99
    %v102 = vmul.f32 %v101, 1.442695
    %v103 = vpow.pop %v102
    %105 = vset.pattern.permute.xlu0 0
    %106 = vperm.xlu0 %105, %v95
    %v107 = vpop.permute.xlu0 %106
    %v109 = vmul.f32 %v107, %v103
    %v110 = vadd.f32 %v109, 0.0
    %111 = vset.pattern.permute.xlu0 5
    %112 = vperm.xlu0 %111, %v84
    %v113 = vpop.permute.xlu0 %112
    %v115 = vmul.f32 %v51, %v113
    %v116 = vmul.f32 %v115, 1.442695
    %v117 = vpow.pop %v116
    %118 = vset.pattern.permute.xlu0 1
    %119 = vperm.xlu0 %118, %v95
    %v120 = vpop.permute.xlu0 %119
    %v122 = vmul.f32 %v120, %v117
    %v123 = vadd.f32 %v110, %v122
    %124 = vset.pattern.permute.xlu0 6
    %125 = vperm.xlu0 %124, %v84
    %v126 = vpop.permute.xlu0 %125
    %v128 = vmul.f32 %v51, %v126
    %v129 = vmul.f32 %v128, 1.442695
    %v130 = vpow.pop %v129
    %131 = vset.pattern.permute.xlu0 2
    %132 = vperm.xlu0 %131, %v95
    %v133 = vpop.permute.xlu0 %132
    %v135 = vmul.f32 %v133, %v130
    %v136 = vadd.f32 %v123, %v135
    %137 = vset.pattern.permute.xlu0 7
    %138 = vperm.xlu0 %137, %v84
    %v139 = vpop.permute.xlu0 %138
    %v141 = vmul.f32 %v51, %v139
    %v142 = vmul.f32 %v141, 1.442695
    %v143 = vpow.pop %v142
    %144 = vset.pattern.permute.xlu0 3
    %145 = vperm.xlu0 %144, %v95
    %v146 = vpop.permute.xlu0 %145
    %v148 = vmul.f32 %v146, %v143
    %v149 = vadd.f32 %v136, %v148
    %vm150 = vcmask 130048
    %v151 = vsel %vm150, %v52, -inf
    %152 = vmax.xlane.f32.xlu0 %v151
    %v153 = vpop.xlane.xlu0 %152
    %v154 = vsub.f32 %v52, %v153
    %v155 = vmul.f32 %v154, 0.5
    %v156 = vmul.f32 %v155, 1.442695
    %v157 = vpow.pop %v156
    %v158 = vmul.f32 %v157, %v157
    %v159 = vsel %vm150, %v158, 0.0
    %160 = vadd.xlane.f32.xlu0 %v159
    %v161 = vpop.xlane.xlu0 %160
    %v162 = vrsqrt.pop %v161
    %v163 = vmul.f32 %v157, %v162
    %v164 = vrsqrt.pop %v149
    %v165 = vmul.f32 %v149, %v164
    %vm166 = vcmp.eq.f32.partialorder %v149, inf
    %v167 = vsel %vm166, %v149, %v165
    %vm168 = vcmp.eq.f32.partialorder %v149, 0.0
    %v169 = vand.u32 %v149, 2147483648
    %v170 = vsel %vm168, %v169, %v167
    %v171 = vsub.f32 %v163, %v170
    %v172 = vmul.f32 %v171, %v171
    %v173 = vsel %vm150, %v172, 0.0
    %174 = vadd.xlane.f32.xlu0 %v173
    %v175 = vpop.xlane.xlu0 %174
    %v176 = vrsqrt.pop %v175
    %v177 = vmul.f32 %v175, %v176
    %vm178 = vcmp.eq.f32.partialorder %v175, inf
    %v179 = vsel %vm178, %v175, %v177
    %vm180 = vcmp.eq.f32.partialorder %v175, 0.0
    %v181 = vand.u32 %v175, 2147483648
    %v182 = vsel %vm180, %v181, %v179
    %v183 = vmul.f32 %v182, 0.70710677
    %v185 = vlaneseq
    %v186 = vand.u32 %v185, 127
    %v187 = vlaneseq
    %v188 = vshrl.u32 %v187, 7
    %v189 = vsub.s32 %v186, %v188
    %v190 = vrot.slane %v183, %v189
    %vm192 = vcmask 57344
    %193 = vst.msk [vmem:[#allocation8] sm:$0x1] %vm192, %v190
    // Predicated region
    $region26: #{tpu_custom_call.1} parent=1 // pred_check
      _
    $region27: #{tpu_custom_call.1} parent=1 // pred_check_branch
      %195 = sbr.rel (0) target = $region29
    $region28: #{tpu_custom_call.1} parent=1 // pred_region
      %s197 = ssub.s32 16, 16
      %198 = vsyncadd [#allocation4], %s197
      %s200 = sshll.u32 [#allocation8], 4
      %s201 = int_to_ptr.vmem [resolvable:$true] %s200
      %203 = dma.vmem_to_hbm [thread:$0]  %s201, 16, %s3, [#allocation4]
    $region29: #{tpu_custom_call.1} parent=1 // pred_fallthru
      _
    // Predicated region
    $region30: #{tpu_custom_call.1} parent=1 // pred_check
      _
    $region31: #{tpu_custom_call.1} parent=1 // pred_check_branch
      %205 = sbr.rel (0) target = $region33
    $region32: #{tpu_custom_call.1} parent=1 // pred_region
      %206 = dma.done [#allocation4], 16
    $region33: #{tpu_custom_call.1} parent=1 // pred_fallthru
      _
    %207 = vsyncpa [#allocation3], 1
    %208 = vsyncpa [#allocation6], 1
    %209 = vsyncpa [#allocation4], 1

</llo_original>
